<compile_context>
chip_gen: v6e
topology: v6e:2x2x1
jax: 0.10.0
libtpu: 0.0.40
codegen_flags: <defaults>
</compile_context>

<pallas_src>
import jax
import jax.numpy as jnp
from jax import lax
from jax.experimental import pallas as pl
from jax.experimental.pallas import tpu as pltpu


_LANE = 128   # vreg lane width (fast axis)


def _cdiv(a, b):
    return -(-a // b)


def _round_up(a, b):
    return _cdiv(a, b) * b


def _make_outconv_kernel(c_in, c_out, s_tile, sub_chunk, k_chunk, sub_align):
    """Per-tile kernel body.

    Refs (in order):
      w_ref : (C_out, C_in) float32  SMEM  -- per-channel scalar weights
      b_ref : (1, C_out)    float32  SMEM
      x_ref : (C_in,  s_tile, 128)   VMEM
      o_ref : (C_out, s_tile, 128)   VMEM
    """
    n_chunks = s_tile // sub_chunk
    unroll = True if n_chunks <= 8 else 8

    def kernel(w_ref, b_ref, x_ref, o_ref):
        # Tiny scalar tables; hoisted out of the strip-mining loop (SMEM sld).
        w_s = [[w_ref[c, k] for k in range(c_in)] for c in range(c_out)]
        b_s = [b_ref[0, c] for c in range(c_out)]

        def body(i, carry):
            s0 = pl.multiple_of(i * sub_chunk, sub_align)
            sl = pl.ds(s0, sub_chunk)
            accs = [None] * c_out
            # Load each input-channel slab once per k-chunk and reuse it for
            # every output channel (C_in loads/chunk instead of C_in*C_out).
            for k0 in range(0, c_in, k_chunk):
                k1 = min(k0 + k_chunk, c_in)
                xk = [x_ref[k, sl, :].astype(jnp.float32) for k in range(k0, k1)]
                for c in range(c_out):
                    acc = accs[c]
                    for j, k in enumerate(range(k0, k1)):
                        term = xk[j] * w_s[c][k]
                        # Bias folded into the first FMA: no trailing
                        # broadcast-add per channel per chunk.
                        acc = term + b_s[c] if acc is None else acc + term
                    accs[c] = acc
            # One contiguous (sub_chunk, 128) store per output channel.
            for c in range(c_out):
                o_ref[c, sl, :] = accs[c].astype(o_ref.dtype)
            return carry

        lax.fori_loop(0, n_chunks, body, 0, unroll=unroll)

    return kernel


def outconv(x_nchw, weight, bias):
    """1x1 conv (nn.Conv2d(in, out, kernel_size=1)) forward.

    x_nchw : (N, C_in, H, W)
    weight : (C_out, C_in, 1, 1)   -- PyTorch conv weight layout
    bias   : (C_out,)
    returns: (N, C_out, H, W)
    """
    N, C_in, H, W = x_nchw.shape
    C_out = weight.shape[0]
    HW = H * W
    dtype = x_nchw.dtype
    itemsize = jnp.dtype(dtype).itemsize
    # dtype-aware sublane packing: 8 rows/vreg f32, 16 bf16, 32 int8/fp8.
    sub_align = 8 * max(1, 4 // itemsize)

    # ---- spatial-on-lanes layout: (N,C,H,W) -> (N, C, R, 128) pure reshape ----
    R = _cdiv(HW, _LANE)
    lane_pad = R * _LANE - HW
    x_flat = x_nchw.reshape(N, C_in, HW)
    if lane_pad:
        # TODO(synk): the ragged HW % 128 != 0 tail still pays one pad + one
        # slice HBM pass; common UNet spatial sizes never hit this path.
        x_flat = jnp.pad(x_flat, ((0, 0), (0, 0), (0, lane_pad)))
    x4 = x_flat.reshape(N, C_in, R, _LANE)

    # ---- tile sizing (channel- and dtype-aware; safe on v5e/v6e/v7x) ----
    # In-kernel strip-mining chunk: bound live vregs to ~48
    # ((k_chunk + C_out + 2) f32 slabs of sub_chunk/8 vregs each).
    k_chunk = min(C_in, 8)
    max_sub = (48 * 8) // (k_chunk + C_out + 2)
    sub_chunk = max(sub_align, (min(64, max_sub) // sub_align) * sub_align)
    sub_chunk = min(sub_chunk, _round_up(R, sub_align))
    # Per-grid-step tile: as large as possible while double-buffered in+out
    # blocks stay under ~28 MiB (fits v7x's 64 MiB VMEM with headroom), capped
    # at 2048 rows; amortizes the ~0.35us per-step grid overhead.
    bytes_per_row = (C_in + C_out) * _LANE * itemsize
    target = min(2048, (28 << 20) // (2 * bytes_per_row))
    s_tile = max(sub_chunk, (target // sub_chunk) * sub_chunk)
    s_tile = min(s_tile, _round_up(R, sub_chunk))
    n_row_tiles = _cdiv(R, s_tile)
    # v7x megacore: guarantee >=2 parallel grid steps when possible so both
    # TensorCores contribute HBM bandwidth.
    if N * n_row_tiles == 1 and s_tile >= 2 * sub_chunk:
        s_tile = _round_up(s_tile // 2, sub_chunk)
        n_row_tiles = _cdiv(R, s_tile)

    w_mat = weight.reshape(C_out, C_in).astype(jnp.float32)   # SMEM scalar table
    b_mat = bias.reshape(1, C_out).astype(jnp.float32)        # SMEM scalar table

    grid = (N, n_row_tiles)

    # VMEM budget: exactly the double-buffered x + out blocks plus slack
    # (no fixed floor — matters on v7x's 64 MiB VMEM).
    x_blk = C_in * s_tile * _LANE * itemsize
    o_blk = C_out * s_tile * _LANE * itemsize
    vmem_limit = int(2 * (x_blk + o_blk) + (4 << 20))

    cost = pl.CostEstimate(
        flops=2 * N * HW * C_in * C_out,
        transcendentals=0,
        bytes_accessed=N * HW * (C_in + C_out) * itemsize
        + (C_in * C_out + C_out) * 4,
    )

    kernel = _make_outconv_kernel(C_in, C_out, s_tile, sub_chunk, k_chunk, sub_align)

    out4 = pl.pallas_call(
        kernel,
        out_shape=jax.ShapeDtypeStruct((N, C_out, R, _LANE), dtype),
        grid_spec=pltpu.PrefetchScalarGridSpec(
            num_scalar_prefetch=0,
            grid=grid,
            in_specs=[
                pl.BlockSpec(memory_space=pltpu.MemorySpace.SMEM),      # weight
                pl.BlockSpec(memory_space=pltpu.MemorySpace.SMEM),      # bias
                pl.BlockSpec((None, C_in, s_tile, _LANE),
                             lambda n, t: (n, 0, t, 0)),                # x tile
            ],
            out_specs=pl.BlockSpec((None, C_out, s_tile, _LANE),
                                   lambda n, t: (n, 0, t, 0)),
        ),
        compiler_params=pltpu.CompilerParams(
            dimension_semantics=("parallel", "parallel"),
            vmem_limit_bytes=vmem_limit,
        ),
        cost_estimate=cost,
    )(w_mat, b_mat, x4)

    out = out4.reshape(N, C_out, R * _LANE)
    if lane_pad:
        out = out[:, :, :HW]
    return out.reshape(N, C_out, H, W)


def init_outconv_params(key, in_channels, out_channels, dtype=jnp.float32):
    """Deterministic init mirroring nn.Conv2d default (kaiming-uniform-ish)."""
    kw, kb = jax.random.split(key)
    fan_in = in_channels * 1 * 1
    bound = 1.0 / jnp.sqrt(fan_in)
    weight = jax.random.uniform(
        kw, (out_channels, in_channels, 1, 1), dtype=dtype, minval=-bound, maxval=bound
    )
    bias = jax.random.uniform(
        kb, (out_channels,), dtype=dtype, minval=-bound, maxval=bound
    )
    return weight, bias


if __name__ == "__main__":
    key = jax.random.PRNGKey(0)
    k_x, k_p = jax.random.split(key)

    # Small shapes for the Decoder's Outconv head.
    N, C_in, H, W = 2, 4, 16, 16
    C_out = 3

    x = jax.random.normal(k_x, (N, C_in, H, W), dtype=jnp.float32)
    weight, bias = init_outconv_params(k_p, C_in, C_out)

    y = jax.block_until_ready(outconv(x, weight, bias))

    # Reference check against plain-JAX 1x1 conv semantics.
    ref = (
        jnp.einsum("nchw,oc->nohw", x, weight.reshape(C_out, C_in))
        + bias.reshape(1, C_out, 1, 1)
    )
    assert y.shape == (N, C_out, H, W), y.shape
    assert jnp.allclose(y, ref, atol=1e-5, rtol=1e-5), float(jnp.max(jnp.abs(y - ref)))

    print("KERNEL_OK")
</pallas_src>

<mosaic_0001>
module attributes {stable_mosaic.version = 11 : i64} {
  func.func @kernel(%arg0: i32, %arg1: i32, %arg2: memref<3x4xf32, #tpu.memory_space<smem>>, %arg3: memref<1x3xf32, #tpu.memory_space<smem>>, %arg4: memref<1x4x8x128xf32, #tpu.memory_space<vmem>>, %arg5: memref<1x3x8x128xf32, #tpu.memory_space<vmem>>) attributes {dimension_semantics = [#tpu.dimension_semantics<parallel>, #tpu.dimension_semantics<parallel>], iteration_bounds = array<i64: 2, 1>, scalar_prefetch = 0 : i64, scratch_operands = 0 : i64, tpu.core_type = #tpu.core_type<tc>, window_params = [{transform_indices = @transform_0, window_bounds = array<i64: 3, 4>}, {transform_indices = @transform_1, window_bounds = array<i64: 1, 3>}, {transform_indices = @transform_2, window_bounds = array<i64: 1, 4, 8, 128>}, {transform_indices = @transform_3, window_bounds = array<i64: 1, 3, 8, 128>}]} {
    %c0 = arith.constant 0 : index
    %c0_0 = arith.constant 0 : index
    %0 = memref.load %arg2[%c0, %c0_0] : memref<3x4xf32, #tpu.memory_space<smem>>
    %c0_1 = arith.constant 0 : index
    %c1 = arith.constant 1 : index
    %1 = memref.load %arg2[%c0_1, %c1] : memref<3x4xf32, #tpu.memory_space<smem>>
    %c0_2 = arith.constant 0 : index
    %c2 = arith.constant 2 : index
    %2 = memref.load %arg2[%c0_2, %c2] : memref<3x4xf32, #tpu.memory_space<smem>>
    %c0_3 = arith.constant 0 : index
    %c3 = arith.constant 3 : index
    %3 = memref.load %arg2[%c0_3, %c3] : memref<3x4xf32, #tpu.memory_space<smem>>
    %c1_4 = arith.constant 1 : index
    %c0_5 = arith.constant 0 : index
    %4 = memref.load %arg2[%c1_4, %c0_5] : memref<3x4xf32, #tpu.memory_space<smem>>
    %c1_6 = arith.constant 1 : index
    %c1_7 = arith.constant 1 : index
    %5 = memref.load %arg2[%c1_6, %c1_7] : memref<3x4xf32, #tpu.memory_space<smem>>
    %c1_8 = arith.constant 1 : index
    %c2_9 = arith.constant 2 : index
    %6 = memref.load %arg2[%c1_8, %c2_9] : memref<3x4xf32, #tpu.memory_space<smem>>
    %c1_10 = arith.constant 1 : index
    %c3_11 = arith.constant 3 : index
    %7 = memref.load %arg2[%c1_10, %c3_11] : memref<3x4xf32, #tpu.memory_space<smem>>
    %c2_12 = arith.constant 2 : index
    %c0_13 = arith.constant 0 : index
    %8 = memref.load %arg2[%c2_12, %c0_13] : memref<3x4xf32, #tpu.memory_space<smem>>
    %c2_14 = arith.constant 2 : index
    %c1_15 = arith.constant 1 : index
    %9 = memref.load %arg2[%c2_14, %c1_15] : memref<3x4xf32, #tpu.memory_space<smem>>
    %c2_16 = arith.constant 2 : index
    %c2_17 = arith.constant 2 : index
    %10 = memref.load %arg2[%c2_16, %c2_17] : memref<3x4xf32, #tpu.memory_space<smem>>
    %c2_18 = arith.constant 2 : index
    %c3_19 = arith.constant 3 : index
    %11 = memref.load %arg2[%c2_18, %c3_19] : memref<3x4xf32, #tpu.memory_space<smem>>
    %c0_20 = arith.constant 0 : index
    %c0_21 = arith.constant 0 : index
    %12 = memref.load %arg3[%c0_20, %c0_21] : memref<1x3xf32, #tpu.memory_space<smem>>
    %c0_22 = arith.constant 0 : index
    %c1_23 = arith.constant 1 : index
    %13 = memref.load %arg3[%c0_22, %c1_23] : memref<1x3xf32, #tpu.memory_space<smem>>
    %c0_24 = arith.constant 0 : index
    %c2_25 = arith.constant 2 : index
    %14 = memref.load %arg3[%c0_24, %c2_25] : memref<1x3xf32, #tpu.memory_space<smem>>
    %c0_i32 = arith.constant 0 : i32
    %c8_i32 = arith.constant 8 : i32
    %15 = arith.muli %c0_i32, %c8_i32 : i32
    %16 = tpu.assume_multiple %15, 8 : i32
    %c0_26 = arith.constant 0 : index
    %c0_27 = arith.constant 0 : index
    %17 = arith.index_cast %16 : i32 to index
    %c0_28 = arith.constant 0 : index
    %18 = vector.load %arg4[%c0_26, %c0_27, %17, %c0_28] : memref<1x4x8x128xf32, #tpu.memory_space<vmem>>, vector<1x1x8x128xf32>
    %19 = vector.shape_cast %18 : vector<1x1x8x128xf32> to vector<8x128xf32>
    %c0_29 = arith.constant 0 : index
    %c1_30 = arith.constant 1 : index
    %20 = arith.index_cast %16 : i32 to index
    %c0_31 = arith.constant 0 : index
    %21 = vector.load %arg4[%c0_29, %c1_30, %20, %c0_31] : memref<1x4x8x128xf32, #tpu.memory_space<vmem>>, vector<1x1x8x128xf32>
    %22 = vector.shape_cast %21 : vector<1x1x8x128xf32> to vector<8x128xf32>
    %c0_32 = arith.constant 0 : index
    %c2_33 = arith.constant 2 : index
    %23 = arith.index_cast %16 : i32 to index
    %c0_34 = arith.constant 0 : index
    %24 = vector.load %arg4[%c0_32, %c2_33, %23, %c0_34] : memref<1x4x8x128xf32, #tpu.memory_space<vmem>>, vector<1x1x8x128xf32>
    %25 = vector.shape_cast %24 : vector<1x1x8x128xf32> to vector<8x128xf32>
    %c0_35 = arith.constant 0 : index
    %c3_36 = arith.constant 3 : index
    %26 = arith.index_cast %16 : i32 to index
    %c0_37 = arith.constant 0 : index
    %27 = vector.load %arg4[%c0_35, %c3_36, %26, %c0_37] : memref<1x4x8x128xf32, #tpu.memory_space<vmem>>, vector<1x1x8x128xf32>
    %28 = vector.shape_cast %27 : vector<1x1x8x128xf32> to vector<8x128xf32>
    %29 = vector.broadcast %0 : f32 to vector<8x128xf32>
    %30 = arith.mulf %19, %29 : vector<8x128xf32>
    %31 = vector.broadcast %12 : f32 to vector<8x128xf32>
    %32 = arith.addf %30, %31 : vector<8x128xf32>
    %33 = vector.broadcast %1 : f32 to vector<8x128xf32>
    %34 = arith.mulf %22, %33 : vector<8x128xf32>
    %35 = arith.addf %32, %34 : vector<8x128xf32>
    %36 = vector.broadcast %2 : f32 to vector<8x128xf32>
    %37 = arith.mulf %25, %36 : vector<8x128xf32>
    %38 = arith.addf %35, %37 : vector<8x128xf32>
    %39 = vector.broadcast %3 : f32 to vector<8x128xf32>
    %40 = arith.mulf %28, %39 : vector<8x128xf32>
    %41 = arith.addf %38, %40 : vector<8x128xf32>
    %42 = vector.broadcast %4 : f32 to vector<8x128xf32>
    %43 = arith.mulf %19, %42 : vector<8x128xf32>
    %44 = vector.broadcast %13 : f32 to vector<8x128xf32>
    %45 = arith.addf %43, %44 : vector<8x128xf32>
    %46 = vector.broadcast %5 : f32 to vector<8x128xf32>
    %47 = arith.mulf %22, %46 : vector<8x128xf32>
    %48 = arith.addf %45, %47 : vector<8x128xf32>
    %49 = vector.broadcast %6 : f32 to vector<8x128xf32>
    %50 = arith.mulf %25, %49 : vector<8x128xf32>
    %51 = arith.addf %48, %50 : vector<8x128xf32>
    %52 = vector.broadcast %7 : f32 to vector<8x128xf32>
    %53 = arith.mulf %28, %52 : vector<8x128xf32>
    %54 = arith.addf %51, %53 : vector<8x128xf32>
    %55 = vector.broadcast %8 : f32 to vector<8x128xf32>
    %56 = arith.mulf %19, %55 : vector<8x128xf32>
    %57 = vector.broadcast %14 : f32 to vector<8x128xf32>
    %58 = arith.addf %56, %57 : vector<8x128xf32>
    %59 = vector.broadcast %9 : f32 to vector<8x128xf32>
    %60 = arith.mulf %22, %59 : vector<8x128xf32>
    %61 = arith.addf %58, %60 : vector<8x128xf32>
    %62 = vector.broadcast %10 : f32 to vector<8x128xf32>
    %63 = arith.mulf %25, %62 : vector<8x128xf32>
    %64 = arith.addf %61, %63 : vector<8x128xf32>
    %65 = vector.broadcast %11 : f32 to vector<8x128xf32>
    %66 = arith.mulf %28, %65 : vector<8x128xf32>
    %67 = arith.addf %64, %66 : vector<8x128xf32>
    %c0_38 = arith.constant 0 : index
    %c0_39 = arith.constant 0 : index
    %68 = arith.index_cast %16 : i32 to index
    %c0_40 = arith.constant 0 : index
    %69 = vector.load %arg5[%c0_38, %c0_39, %68, %c0_40] : memref<1x3x8x128xf32, #tpu.memory_space<vmem>>, vector<1x1x8x128xf32>
    %70 = vector.shape_cast %69 : vector<1x1x8x128xf32> to vector<8x128xf32>
    %71 = vector.shape_cast %41 : vector<8x128xf32> to vector<1x1x8x128xf32>
    tpu.vector_store %arg5[%c0_38, %c0_39, %68, %c0_40], %71 {strides = array<i32>} : memref<1x3x8x128xf32, #tpu.memory_space<vmem>>, vector<1x1x8x128xf32>,
    %c0_41 = arith.constant 0 : index
    %c1_42 = arith.constant 1 : index
    %72 = arith.index_cast %16 : i32 to index
    %c0_43 = arith.constant 0 : index
    %73 = vector.load %arg5[%c0_41, %c1_42, %72, %c0_43] : memref<1x3x8x128xf32, #tpu.memory_space<vmem>>, vector<1x1x8x128xf32>
    %74 = vector.shape_cast %73 : vector<1x1x8x128xf32> to vector<8x128xf32>
    %75 = vector.shape_cast %54 : vector<8x128xf32> to vector<1x1x8x128xf32>
    tpu.vector_store %arg5[%c0_41, %c1_42, %72, %c0_43], %75 {strides = array<i32>} : memref<1x3x8x128xf32, #tpu.memory_space<vmem>>, vector<1x1x8x128xf32>,
    %c0_44 = arith.constant 0 : index
    %c2_45 = arith.constant 2 : index
    %76 = arith.index_cast %16 : i32 to index
    %c0_46 = arith.constant 0 : index
    %77 = vector.load %arg5[%c0_44, %c2_45, %76, %c0_46] : memref<1x3x8x128xf32, #tpu.memory_space<vmem>>, vector<1x1x8x128xf32>
    %78 = vector.shape_cast %77 : vector<1x1x8x128xf32> to vector<8x128xf32>
    %79 = vector.shape_cast %67 : vector<8x128xf32> to vector<1x1x8x128xf32>
    tpu.vector_store %arg5[%c0_44, %c2_45, %76, %c0_46], %79 {strides = array<i32>} : memref<1x3x8x128xf32, #tpu.memory_space<vmem>>, vector<1x1x8x128xf32>,
    %c1_i32 = arith.constant 1 : i32
    return
  }
  func.func @transform_0(%arg0: i32, %arg1: i32) -> (i32, i32) {
    %c0_i32 = arith.constant 0 : i32
    %c0_i32_0 = arith.constant 0 : i32
    %c0_i32_1 = arith.constant 0 : i32
    return %c0_i32, %c0_i32_0 : i32, i32
  }
  func.func @transform_1(%arg0: i32, %arg1: i32) -> (i32, i32) {
    %c0_i32 = arith.constant 0 : i32
    %c0_i32_0 = arith.constant 0 : i32
    %c0_i32_1 = arith.constant 0 : i32
    return %c0_i32, %c0_i32_0 : i32, i32
  }
  func.func @transform_2(%arg0: i32, %arg1: i32) -> (i32, i32, i32, i32) {
    %c0_i32 = arith.constant 0 : i32
    %c0_i32_0 = arith.constant 0 : i32
    %c0_i32_1 = arith.constant 0 : i32
    return %arg0, %c0_i32, %arg1, %c0_i32_0 : i32, i32, i32, i32
  }
  func.func @transform_3(%arg0: i32, %arg1: i32) -> (i32, i32, i32, i32) {
    %c0_i32 = arith.constant 0 : i32
    %c0_i32_0 = arith.constant 0 : i32
    %c0_i32_1 = arith.constant 0 : i32
    return %arg0, %c0_i32, %arg1, %c0_i32_0 : i32, i32, i32, i32
  }
}

</mosaic_0001>

<llo_original>
// kernel: tpu_custom_call.1
$region0: #{tpu_custom_call.1}
  #allocation0 [shape = 'u32[]', space=smem, size = 0x4, offset = 0x4, fixed_abs, tag = 'smem constant byte address 0x4 - core index']
  #allocation1 [shape = 'u32[144,128]{1,0:T(1,128)}', space=vmem, size = 0x12000, scoped, tag = 'internal scratch']
  #allocation10 [shape = 's32[]', space=sflag, size = 0x4, offset = 0, fixed_abs, tag = 'sflag constant byte address 0x0 - dummy sync flag']
  #allocation12 [shape = 's32[]', space=sflag, size = 0x4, offset = 0, fixed_abs, tag = 'sflag constant byte address 0x0 - dummy sync flag']
  %s0 = inlined_call_operand.hbm [shape: f32[3,4], index: 0, kind: input, shape index: {}]
  %s1 = inlined_call_operand.vmem [shape: f32[1,3], index: 1, kind: input, shape index: {}]
  %s2 = inlined_call_operand.hbm [shape: f32[2,4,2,128], index: 2, kind: input, shape index: {}]
  %s3 = inlined_call_operand.hbm [shape: f32[2,3,2,128], index: 3, kind: output, shape index: {}]
  %s4 = sld [smem:[#allocation0]]
  $region57: #{tpu_custom_call.1} parent=0
    _
  %s6 = ssub.s32 1, %s4
  %s7 = scalar_select 0, %s6, %s4
  $region1: #{tpu_custom_call.1} parent=0
    #allocation2 [shape = 'u8[2048]{0}', space=smem, size = 0x800, scoped, tag = 'input window, operand 0, single buffered']
    #allocation3 [shape = 's32[2]{0}', space=sflag, size = 0x8, scoped, tag = 'scoped memory for tpu_custom_call.1']
    #allocation4 [shape = 's32[2]{0}', space=sflag, size = 0x8, scoped, tag = 'scoped memory for tpu_custom_call.1']
    #allocation5 [shape = 's32[2]{0}', space=sflag, size = 0x8, scoped, tag = 'scoped memory for tpu_custom_call.1']
    #allocation6 [shape = 's32[2]{0}', space=sflag, size = 0x8, scoped, tag = 'scoped memory for tpu_custom_call.1']
    #allocation7 [shape = 'u8[512]{0}', space=smem, size = 0x200, scoped, tag = 'input window, operand 1, single buffered']
    #allocation8 [shape = 'u8[32768]{0}', space=vmem, size = 0x8000, scoped, tag = 'input window, operand 2']
    #allocation9 [shape = 'u8[24576]{0}', space=vmem, size = 0x6000, scoped, tag = 'output window, operand 0']
    %8 = vsyncpa [#allocation5], 0
    %9 = vsyncpa [#allocation6], 0
    %10 = vsyncpa [#allocation3], 0
    %s11 = scalar_lea.sflag [#allocation3], 1
    %12 = vsyncpa %s11, 0
    %13 = vsyncpa [#allocation4], 0
    %s14 = scalar_lea.sflag [#allocation4], 1
    %15 = vsyncpa %s14, 0
    loop: start=0, step=1, limit=4
    $region2: #{tpu_custom_call.1} parent=1 // loop_pre_header
      _
    $region3: #{tpu_custom_call.1} parent=1 // loop_header
      %s17 = sphi 0, %s21
      %p18 = scmp.ge.s32.totalorder %s17, 4
      %s24 = sphi 0, %s36
      %s25 = sphi 0, %s32
      %s26 = sphi 0, %s24
      %s27 = sphi 0, %s25
      %s28 = sphi 0, %s26
      %s29 = sphi 0, %s27
      %s37 = sphi 0, %s37
      %s39 = sphi 0, %s37
      %s40 = sphi 0, %s39
      %s54 = sphi 0, %s40
      %s58 = sphi 0, %s58
      %s60 = sphi 0, %s58
      %s61 = sphi 0, %s60
      %s75 = sphi 0, %s61
      %s83 = sphi 0, %s85
      %s86 = sphi 0, %s83
      %s87 = sphi 0, %s86
      %s103 = sphi 0, %s87
      %s111 = sphi 0, %s113
      %s114 = sphi 0, %s111
      %s115 = sphi 0, %s114
      %s131 = sphi 0, %s115
    $region4: #{tpu_custom_call.1} parent=1 // loop_header_branch
      %20 = sbr.rel (%p18) target = $region8
    $region5: #{tpu_custom_call.1} parent=1 // loop_body
      %s22 = ssub.s32 %s17, 1
      %s23 = ssub.s32 %s17, 2
      %s30 = sadd.s32 1, %s25
      %p31 = scmp.ge.s32.totalorder %s30, 1
      %s32 = scalar_select %p31, 0, %s30
      %s33 = sadd.s32 1, %s24
      %s34 = scalar_select %p31, %s33, %s24
      %p35 = scmp.ge.s32.totalorder %s34, 2
      %s36 = scalar_select %p35, 0, %s34
      %s38 = sadd.s32 %s37, 1
      %p41 = scmp.eq.s32.totalorder %s17, 1
      %p42 = scmp.ne.s32.totalorder %s37, %s39
      %p43 = scmp.eq.s32.totalorder %s17, 0
      %p44 = por %p42, %p43
      %p45 = scmp.ne.s32.totalorder %s37, %s39
      %p46 = scmp.eq.s32.totalorder %s22, 1
      %p47 = por %p45, %p46
      %p48 = scmp.ne.s32.totalorder %s39, %s40
      %p49 = scmp.eq.s32.totalorder %s22, 0
      %p50 = por %p48, %p49
      %p51 = scmp.ne.s32.totalorder %s39, %s40
      %p52 = scmp.eq.s32.totalorder %s23, 1
      %p53 = por %p51, %p52
      %p55 = scmp.ne.s32.totalorder %s40, %s54
      %p56 = scmp.eq.s32.totalorder %s23, 0
      %p57 = por %p55, %p56
      %s59 = sadd.s32 %s58, 1
      %p62 = scmp.eq.s32.totalorder %s17, 1
      %p63 = scmp.ne.s32.totalorder %s58, %s60
      %p64 = scmp.eq.s32.totalorder %s17, 0
      %p65 = por %p63, %p64
      %p66 = scmp.ne.s32.totalorder %s58, %s60
      %p67 = scmp.eq.s32.totalorder %s22, 1
      %p68 = por %p66, %p67
      %p69 = scmp.ne.s32.totalorder %s60, %s61
      %p70 = scmp.eq.s32.totalorder %s22, 0
      %p71 = por %p69, %p70
      %p72 = scmp.ne.s32.totalorder %s60, %s61
      %p73 = scmp.eq.s32.totalorder %s23, 1
      %p74 = por %p72, %p73
      %p76 = scmp.ne.s32.totalorder %s61, %s75
      %p77 = scmp.eq.s32.totalorder %s23, 0
      %p78 = por %p76, %p77
      %s79 = ssub.s32 %s24, %s36
      %s80 = ssub.s32 %s25, %s32
      %s81 = sor.u32 %s79, %s80
      %p82 = scmp.eq.s32.totalorder %s81, 0
      %s84 = sadd.s32 %s83, 1
      %s85 = scalar_select %p82, %s83, %s84
      %p88 = pneg %p82
      %p89 = scmp.eq.s32.totalorder %s17, 1
      %p90 = por %p88, %p89
      %p91 = scmp.ne.s32.totalorder %s83, %s86
      %p92 = scmp.eq.s32.totalorder %s17, 0
      %p93 = por %p91, %p92
      %p94 = scmp.ne.s32.totalorder %s83, %s86
      %p95 = scmp.eq.s32.totalorder %s22, 1
      %p96 = por %p94, %p95
      %p97 = scmp.ne.s32.totalorder %s86, %s87
      %p98 = scmp.eq.s32.totalorder %s22, 0
      %p99 = por %p97, %p98
      %p100 = scmp.ne.s32.totalorder %s86, %s87
      %p101 = scmp.eq.s32.totalorder %s23, 1
      %p102 = por %p100, %p101
      %p104 = scmp.ne.s32.totalorder %s87, %s103
      %p105 = scmp.eq.s32.totalorder %s23, 0
      %p106 = por %p104, %p105
      %s107 = ssub.s32 %s24, %s36
      %s108 = ssub.s32 %s25, %s32
      %s109 = sor.u32 %s107, %s108
      %p110 = scmp.eq.s32.totalorder %s109, 0
      %s112 = sadd.s32 %s111, 1
      %s113 = scalar_select %p110, %s111, %s112
      %p116 = pneg %p110
      %p117 = scmp.eq.s32.totalorder %s17, 1
      %p118 = por %p116, %p117
      %p119 = scmp.ne.s32.totalorder %s111, %s114
      %p120 = scmp.eq.s32.totalorder %s17, 0
      %p121 = por %p119, %p120
      %p122 = scmp.ne.s32.totalorder %s111, %s114
      %p123 = scmp.eq.s32.totalorder %s22, 1
      %p124 = por %p122, %p123
      %p125 = scmp.ne.s32.totalorder %s114, %s115
      %p126 = scmp.eq.s32.totalorder %s22, 0
      %p127 = por %p125, %p126
      %p128 = scmp.ne.s32.totalorder %s114, %s115
      %p129 = scmp.eq.s32.totalorder %s23, 1
      %p130 = por %p128, %p129
      %p132 = scmp.ne.s32.totalorder %s115, %s131
      %p133 = scmp.eq.s32.totalorder %s23, 0
      %p134 = por %p132, %p133
      %p135 = scmp.le.s32.totalorder 1, %s17
      %p136 = scmp.lt.s32.totalorder %s17, 3
      %p137 = pnand %p135, %p136
      %p138 = pneg %p137
      // Predicated region
      $region9: #{tpu_custom_call.1} parent=5 // pred_check
        _
      $region10: #{tpu_custom_call.1} parent=5 // pred_check_branch
        %140 = sbr.rel (%p137) target = $region12
      $region11: #{tpu_custom_call.1} parent=5 // pred_region
        %s141 = ssub.s32 %s17, 1
        // Predicated region
        $region13: #{tpu_custom_call.1} parent=11 // pred_check
          %p142 = pneg %p50
        $region14: #{tpu_custom_call.1} parent=11 // pred_check_branch
          %144 = sbr.rel (%p142) target = $region16
        $region15: #{tpu_custom_call.1} parent=11 // pred_region
          %s146 = ssub.s32 64, 64
          %147 = vsyncadd [#allocation5], %s146
          %150 = dma.hbm_to_smem %s0, 64, [#allocation2], [#allocation5]
        $region16: #{tpu_custom_call.1} parent=11 // pred_fallthru
          _
        // Predicated region
        $region17: #{tpu_custom_call.1} parent=11 // pred_check
          %p151 = pneg %p71
        $region18: #{tpu_custom_call.1} parent=11 // pred_check_branch
          %153 = sbr.rel (%p151) target = $region20
        $region19: #{tpu_custom_call.1} parent=11 // pred_region
          %s155 = ssub.s32 16, 16
          %156 = vsyncadd [#allocation6], %s155
          %s158 = sshll.u32 %s1, 4
          %s159 = int_to_ptr.vmem [resolvable:$true] %s158
          %161 = dma.vmem_to_smem %s159, 16, [#allocation7], [#allocation6]
        $region20: #{tpu_custom_call.1} parent=11 // pred_fallthru
          _
      $region12: #{tpu_custom_call.1} parent=5 // pred_fallthru
        _
      %p162 = scmp.lt.s32.totalorder %s17, 2
      // Predicated region
      $region21: #{tpu_custom_call.1} parent=5 // pred_check
        %p163 = pneg %p162
      $region22: #{tpu_custom_call.1} parent=5 // pred_check_branch
        %165 = sbr.rel (%p163) target = $region24
      $region23: #{tpu_custom_call.1} parent=5 // pred_region
        // Predicated region
        $region25: #{tpu_custom_call.1} parent=23 // pred_check
          %p166 = pneg %p93
        $region26: #{tpu_custom_call.1} parent=23 // pred_check_branch
          %168 = sbr.rel (%p166) target = $region28
        $region27: #{tpu_custom_call.1} parent=23 // pred_region
          #allocation11 [shape = 'u32[6]{0}', space=smem, size = 0x18, scoped, tag = 'DMA stride descriptor']
          %s169 = sand.u32 %s83, 1
          %s170 = scalar_lea.sflag [#allocation3], %s169
          %s171 = sand.u32 %s83, 1
          %s172 = smul.addr %s171, 32
          %s173 = scalar_lea.vmem [#allocation8], %s172
          %s174 = smul.u32 4, %s25
          %s175 = ssub.s32 1, %s174
          %s176 = smul.u32 128, %s175
          %s178 = ssub.s32 512, %s176
          %179 = vsyncadd %s170, %s178
          %p180 = scmp.ne.s32.totalorder 0, %s176
          %s181 = smul.addr %s24, 4
          %s182 = sadd.s32 %s174, %s181
          %s183 = smul.addr %s182, 32
          %s184 = scalar_lea.hbm %s2, %s183
          %s185 = smul.u32 2, %s175
          %s186 = smul.u32 %s185, 4
          %s188 = sshll.u32 1, 14
          %s189 = sxor.u32 4294967295, %s188
          %s191 = sld [smem:[#allocation0]]
          %s192 = sadd.s32 2, %s191
          %s194 = sshll.u32 7, 26
          %s195 = sxor.u32 4294967295, %s194
          %s196 = sand.u32 0, %s195
          %s197 = sshll.u32 %s192, 26
          %s198 = sor.u32 %s196, %s197
          %s199 = sshll.u32 %s173, 4
          %s200 = int_to_ptr.vmem [resolvable:$true] %s199
          %s201 = sshll.u32 %s186, 4
          %206 = sst [smem:[#allocation11]] 32
          %s207 = scalar_lea.smem [#allocation11], 1
          %208 = sst [smem:[%s207]] 128
          %s209 = scalar_lea.smem [#allocation11], 2
          %210 = sst [smem:[%s209]] %s175
          %s211 = scalar_lea.smem [#allocation11], 3
          %212 = sst [smem:[%s211]] 32
          %s213 = scalar_lea.smem [#allocation11], 4
          %214 = sst [smem:[%s213]] 32
          %s215 = scalar_lea.smem [#allocation11], 5
          %216 = sst [smem:[%s215]] 2
          %218 = dma.general (%p180), %s184, %s201, %s200, %s170, 131072, [#allocation11], %s198, 0
        $region28: #{tpu_custom_call.1} parent=23 // pred_fallthru
          _
      $region24: #{tpu_custom_call.1} parent=5 // pred_fallthru
        _
      %p219 = scmp.le.s32.totalorder 1, %s17
      %p220 = scmp.lt.s32.totalorder %s17, 3
      %p221 = pnand %p219, %p220
      %p222 = pneg %p221
      // Predicated region
      $region29: #{tpu_custom_call.1} parent=5 // pred_check
        _
      $region30: #{tpu_custom_call.1} parent=5 // pred_check_branch
        %224 = sbr.rel (%p221) target = $region32
      $region31: #{tpu_custom_call.1} parent=5 // pred_region
        %s225 = ssub.s32 %s17, 1
        // Predicated region
        $region33: #{tpu_custom_call.1} parent=31 // pred_check
          %p226 = pneg %p50
        $region34: #{tpu_custom_call.1} parent=31 // pred_check_branch
          %228 = sbr.rel (%p226) target = $region36
        $region35: #{tpu_custom_call.1} parent=31 // pred_region
          %229 = dma.done [#allocation5], 64
        $region36: #{tpu_custom_call.1} parent=31 // pred_fallthru
          _
        // Predicated region
        $region37: #{tpu_custom_call.1} parent=31 // pred_check
          %p230 = pneg %p71
        $region38: #{tpu_custom_call.1} parent=31 // pred_check_branch
          %232 = sbr.rel (%p230) target = $region40
        $region39: #{tpu_custom_call.1} parent=31 // pred_region
          %233 = dma.done [#allocation6], 16
        $region40: #{tpu_custom_call.1} parent=31 // pred_fallthru
          _
        %s234 = sand.u32 %s86, 1
        %s235 = scalar_lea.sflag [#allocation3], %s234
        %s236 = sand.u32 %s86, 1
        %s237 = smul.addr %s236, 32
        %s238 = scalar_lea.vmem [#allocation8], %s237
        // Predicated region
        $region41: #{tpu_custom_call.1} parent=31 // pred_check
          %p239 = pneg %p99
        $region42: #{tpu_custom_call.1} parent=31 // pred_check_branch
          %241 = sbr.rel (%p239) target = $region44
        $region43: #{tpu_custom_call.1} parent=31 // pred_region
          %242 = dma.done %s235, 512
        $region44: #{tpu_custom_call.1} parent=31 // pred_fallthru
          _
        %243 = sfence
        %p244 = pneg %p50
        %p245 = pneg %p47
        %p246 = pneg %p71
        %p247 = pneg %p68
        %s248 = sand.u32 %s86, 1
        %s249 = scalar_lea.sflag [#allocation3], %s248
        %s250 = sand.u32 %s86, 1
        %s251 = smul.addr %s250, 32
        %s252 = scalar_lea.vmem [#allocation8], %s251
        %p253 = pneg %p99
        %p254 = pneg %p96
        %p255 = pneg %p127
        %p256 = pneg %p124
        %s257 = sand.u32 %s114, 1
        %s258 = scalar_lea.sflag [#allocation4], %s257
        %s259 = sand.u32 %s114, 1
        %s260 = smul.addr %s259, 24
        %s261 = scalar_lea.vmem [#allocation9], %s260
        %s262 = smul.u32 4, %s27
        %s263 = ssub.s32 1, %s262
        %s264 = smul.u32 128, %s263
        %s265 = smul.u32 4, %s27
        %s266 = ssub.s32 1, %s265
        %s267 = smul.u32 96, %s266
        %s268 = sld [smem:[#allocation2]]
        %s269 = sld [smem:[#allocation2 + $0x1]]
        %s270 = sld [smem:[#allocation2 + $0x2]]
        %s271 = sld [smem:[#allocation2 + $0x3]]
        %s272 = sld [smem:[#allocation2 + $0x80]]
        %s273 = sld [smem:[#allocation2 + $0x81]]
        %s274 = sld [smem:[#allocation2 + $0x82]]
        %s275 = sld [smem:[#allocation2 + $0x83]]
        %s276 = sld [smem:[#allocation2 + $0x100]]
        %s277 = sld [smem:[#allocation2 + $0x101]]
        %s278 = sld [smem:[#allocation2 + $0x102]]
        %s279 = sld [smem:[#allocation2 + $0x103]]
        %s280 = sld [smem:[#allocation7]]
        %s281 = sld [smem:[#allocation7 + $0x1]]
        %s282 = sld [smem:[#allocation7 + $0x2]]
        %v283 = vld [vmem:[%s238] sm:$0xff]
        %s284 = sadd.s32 0, 8
        %s285 = scalar_lea.vmem %s238, %s284 [#allocation8]
        %v286 = vld [vmem:[%s285] sm:$0xff]
        %s287 = sadd.s32 0, 16
        %s288 = scalar_lea.vmem %s238, %s287 [#allocation8]
        %v289 = vld [vmem:[%s288] sm:$0xff]
        %s290 = sadd.s32 0, 24
        %s291 = scalar_lea.vmem %s238, %s290 [#allocation8]
        %v292 = vld [vmem:[%s291] sm:$0xff]
        %v293 = vstv %s268
        %v294 = vmul.f32 %v283, %v293
        %v295 = vstv %s280
        %v296 = vadd.f32 %v294, %v295
        %v297 = vstv %s269
        %v298 = vmul.f32 %v286, %v297
        %v299 = vadd.f32 %v296, %v298
        %v300 = vstv %s270
        %v301 = vmul.f32 %v289, %v300
        %v302 = vadd.f32 %v299, %v301
        %v303 = vstv %s271
        %v304 = vmul.f32 %v292, %v303
        %v305 = vadd.f32 %v302, %v304
        %v306 = vstv %s272
        %v307 = vmul.f32 %v283, %v306
        %v308 = vstv %s281
        %v309 = vadd.f32 %v307, %v308
        %v310 = vstv %s273
        %v311 = vmul.f32 %v286, %v310
        %v312 = vadd.f32 %v309, %v311
        %v313 = vstv %s274
        %v314 = vmul.f32 %v289, %v313
        %v315 = vadd.f32 %v312, %v314
        %v316 = vstv %s275
        %v317 = vmul.f32 %v292, %v316
        %v318 = vadd.f32 %v315, %v317
        %v319 = vstv %s276
        %v320 = vmul.f32 %v283, %v319
        %v321 = vstv %s282
        %v322 = vadd.f32 %v320, %v321
        %v323 = vstv %s277
        %v324 = vmul.f32 %v286, %v323
        %v325 = vadd.f32 %v322, %v324
        %v326 = vstv %s278
        %v327 = vmul.f32 %v289, %v326
        %v328 = vadd.f32 %v325, %v327
        %v329 = vstv %s279
        %v330 = vmul.f32 %v292, %v329
        %v331 = vadd.f32 %v328, %v330
        %332 = vst [vmem:[%s261] sm:$0xff] %v305
        %s333 = scalar_lea.vmem %s261, %s284 [#allocation9]
        %334 = vst [vmem:[%s333] sm:$0xff] %v318
        %s335 = scalar_lea.vmem %s261, %s287 [#allocation9]
        %336 = vst [vmem:[%s335] sm:$0xff] %v331
        %s337 = sand.u32 %s114, 1
        %s338 = scalar_lea.sflag [#allocation4], %s337
        %s339 = sand.u32 %s114, 1
        %s340 = smul.addr %s339, 24
        %s341 = scalar_lea.vmem [#allocation9], %s340
        // Predicated region
        $region45: #{tpu_custom_call.1} parent=31 // pred_check
          %p342 = pneg %p124
        $region46: #{tpu_custom_call.1} parent=31 // pred_check_branch
          %344 = sbr.rel (%p342) target = $region48
        $region47: #{tpu_custom_call.1} parent=31 // pred_region
          #allocation13 [shape = 'u32[6]{0}', space=smem, size = 0x18, scoped, tag = 'DMA stride descriptor']
          %s345 = smul.u32 4, %s27
          %s346 = ssub.s32 1, %s345
          %s347 = smul.u32 96, %s346
          %s349 = ssub.s32 384, %s347
          %350 = vsyncadd %s338, %s349
          %p351 = scmp.ne.s32.totalorder 0, %s347
          %s352 = smul.addr %s26, 3
          %s353 = sadd.s32 %s345, %s352
          %s354 = smul.addr %s353, 32
          %s355 = scalar_lea.hbm %s3, %s354
          %s356 = smul.u32 2, %s346
          %s357 = smul.u32 %s356, 3
          %s359 = sshll.u32 1, 14
          %s360 = sxor.u32 4294967295, %s359
          %s363 = sshll.u32 7, 18
          %s364 = sxor.u32 4294967295, %s363
          %s365 = sand.u32 0, %s364
          %s367 = sor.u32 %s365, 0
          %s368 = sshll.u32 %s341, 4
          %s369 = int_to_ptr.vmem [resolvable:$true] %s368
          %s370 = sshll.u32 %s357, 4
          %375 = sst [smem:[#allocation13]] 128
          %s376 = scalar_lea.smem [#allocation13], 1
          %377 = sst [smem:[%s376]] 32
          %s378 = scalar_lea.smem [#allocation13], 2
          %379 = sst [smem:[%s378]] %s346
          %s380 = scalar_lea.smem [#allocation13], 3
          %381 = sst [smem:[%s380]] 32
          %s382 = scalar_lea.smem [#allocation13], 4
          %383 = sst [smem:[%s382]] 32
          %s384 = scalar_lea.smem [#allocation13], 5
          %385 = sst [smem:[%s384]] 2
          %387 = dma.general (%p351), %s369, %s370, %s355, %s338, 131072, [#allocation13], %s367, 0
        $region48: #{tpu_custom_call.1} parent=31 // pred_fallthru
          _
      $region32: #{tpu_custom_call.1} parent=5 // pred_fallthru
        _
      %p388 = scmp.le.s32.totalorder 2, %s17
      // Predicated region
      $region49: #{tpu_custom_call.1} parent=5 // pred_check
        %p389 = pneg %p388
      $region50: #{tpu_custom_call.1} parent=5 // pred_check_branch
        %391 = sbr.rel (%p389) target = $region52
      $region51: #{tpu_custom_call.1} parent=5 // pred_region
        %s392 = ssub.s32 %s17, 2
        // Predicated region
        $region53: #{tpu_custom_call.1} parent=51 // pred_check
          %p393 = pneg %p130
        $region54: #{tpu_custom_call.1} parent=51 // pred_check_branch
          %395 = sbr.rel (%p393) target = $region56
        $region55: #{tpu_custom_call.1} parent=51 // pred_region
          %s396 = sand.u32 %s115, 1
          %s397 = scalar_lea.sflag [#allocation4], %s396
          %s398 = sand.u32 %s115, 1
          %s399 = smul.addr %s398, 24
          %s400 = scalar_lea.vmem [#allocation9], %s399
          %401 = dma.done %s397, 384
        $region56: #{tpu_custom_call.1} parent=51 // pred_fallthru
          _
      $region52: #{tpu_custom_call.1} parent=5 // pred_fallthru
        _
    $region6: #{tpu_custom_call.1} parent=1 // loop_footer
      %s21 = sadd.s32 1, %s17
    $region7: #{tpu_custom_call.1} parent=1 // loop_footer_branch
      %16 = sbr.rel target = $region3
    $region8: #{tpu_custom_call.1} parent=1 // loop_exit
      _
    %402 = vsyncpa [#allocation3], 1
    %s403 = scalar_lea.sflag [#allocation3], 1
    %404 = vsyncpa %s403, 1
    %405 = vsyncpa [#allocation4], 1
    %s406 = scalar_lea.sflag [#allocation4], 1
    %407 = vsyncpa %s406, 1
    %408 = vsyncpa [#allocation5], 1
    %s409 = scalar_lea.sflag [#allocation5], 1
    %410 = vsyncpa %s409, 1
    %411 = vsyncpa [#allocation6], 1
    %s412 = scalar_lea.sflag [#allocation6], 1
    %413 = vsyncpa %s412, 1

</llo_original>
